<compile_context>
chip_gen: v7x
topology: tpu7x:2x2x1
jax: 0.10.0
libtpu: 0.0.40
codegen_flags: <defaults>
</compile_context>

<pallas_src>
import jax
import jax.numpy as jnp
from jax.experimental import pallas as pl
from jax.experimental.pallas import tpu as pltpu


def _dma_copy_kernel(x_hbm, o_hbm, sem):
    # Single HBM->HBM DMA of the whole tensor; no VMEM staging, no tiling.
    cp = pltpu.make_async_copy(x_hbm, o_hbm, sem)
    cp.start()
    cp.wait()


def _materialized_identity(inputs: jax.Array) -> jax.Array:
    """Copy `inputs` into a fresh HBM buffer with one DMA (no grid)."""
    return pl.pallas_call(
        _dma_copy_kernel,
        out_shape=jax.ShapeDtypeStruct(inputs.shape, inputs.dtype),
        in_specs=[pl.BlockSpec(memory_space=pl.ANY)],
        out_specs=pl.BlockSpec(memory_space=pl.ANY),
        scratch_shapes=[pltpu.SemaphoreType.DMA(())],
    )(inputs)


def encoder_interface_forward(inputs: jax.Array, input_lengths: jax.Array,
                              *, materialize_copy: bool = True):
    """EncoderInterface.forward pass-through contract.

    Args:
      inputs:        (batch, seq_length, dimension) float array.
      input_lengths: (batch,) int array.
      materialize_copy: if False, return `inputs` directly (identity is
        metadata-only in JAX — zero HBM traffic, the fastest correct option
        and the recommended production default). If True, produce a freshly
        materialized buffer via a single HBM->HBM DMA Pallas kernel.

    Returns:
      (outputs, output_lengths) with identical shapes/dtypes/values.
    """
    if not materialize_copy:
        # Highest-value optimization: no kernel, no copy.
        return inputs, input_lengths

    outputs = _materialized_identity(inputs)
    # Lengths pass through unchanged (pure metadata; no compute in the interface).
    return outputs, input_lengths


if __name__ == "__main__":
    key = jax.random.PRNGKey(0)
    k_in, k_len = jax.random.split(key)

    batch, seq_len, dim = 2, 8, 32
    inputs = jax.random.normal(k_in, (batch, seq_len, dim), dtype=jnp.float32)
    input_lengths = jax.random.randint(
        k_len, (batch,), minval=1, maxval=seq_len + 1, dtype=jnp.int32
    )

    # Exercise the Pallas HBM->HBM DMA copy path.
    forward = jax.jit(encoder_interface_forward)
    outputs, output_lengths = forward(inputs, input_lengths)
    outputs = jax.block_until_ready(outputs)
    output_lengths = jax.block_until_ready(output_lengths)

    # Pass-through contract checks.
    assert outputs.shape == inputs.shape and outputs.dtype == inputs.dtype
    assert bool(jnp.array_equal(outputs, inputs))
    assert bool(jnp.array_equal(output_lengths, input_lengths))

    # Zero-copy fast path (the production default recommendation); checked in
    # eager mode where returning the same array object is well-defined.
    fast_out, fast_len = encoder_interface_forward(
        inputs, input_lengths, materialize_copy=False
    )
    assert fast_out is inputs and fast_len is input_lengths
    assert bool(jnp.array_equal(fast_out, inputs))

    print("KERNEL_OK")
</pallas_src>

<mosaic_0001>
module attributes {stable_mosaic.version = 11 : i64} {
  func.func @_dma_copy_kernel(%arg0: memref<2x8x32xf32, #tpu.memory_space<any>>, %arg1: memref<2x8x32xf32, #tpu.memory_space<any>>, %arg2: memref<!tpu.dma_semaphore, #tpu.memory_space<semaphore_mem>>) attributes {dimension_semantics = [], scalar_prefetch = 0 : i64, scratch_operands = 1 : i64, tpu.core_type = #tpu.core_type<tc>} {
    tpu.enqueue_dma source(%arg0 : memref<2x8x32xf32, #tpu.memory_space<any>>) target(%arg1 : memref<2x8x32xf32, #tpu.memory_space<any>>) target_semaphore(%arg2 : memref<!tpu.dma_semaphore, #tpu.memory_space<semaphore_mem>>)
    tpu.wait_dma2 semaphore(%arg2 : memref<!tpu.dma_semaphore, #tpu.memory_space<semaphore_mem>>) src(%arg0 : memref<2x8x32xf32, #tpu.memory_space<any>>) dst(%arg1 : memref<2x8x32xf32, #tpu.memory_space<any>>)
    return
  }
}

</mosaic_0001>

<llo_original>
// kernel: encoder_interface_forward.1
$region0: #{encoder_interface_forward.1}
  #allocation0 [shape = 'u32[]', space=smem, size = 0x4, offset = 0x4, fixed_abs, tag = 'smem constant byte address 0x4 - core index']
  #allocation1 [shape = 'u32[144,128]{1,0:T(1,128)}', space=vmem, size = 0x12000, scoped, tag = 'internal scratch']
  #allocation2 [shape = 's32[1]{0}', space=sflag, size = 0x4, scoped, tag = 'scratch operand']
  #allocation3 [shape = 's32[]', space=sflag, size = 0x4, offset = 0, fixed_abs, tag = 'sflag constant byte address 0x0 - dummy sync flag']
  #allocation4 [shape = 'u32[0]{0}', space=smem, size = 0, offset = 0, fixed_abs, tag = 'smem constant byte address 0x0 - null']
  %s0 = inlined_call_operand.hbm [shape: f32[2,8,32], index: 0, kind: input, shape index: {}]
  %s1 = inlined_call_operand.hbm [shape: f32[2,8,32], index: 1, kind: output, shape index: {}]
  %s2 = sld [smem:[#allocation0]]
  $region2: #{encoder_interface_forward.1} parent=0
    _
  %s4 = ssub.s32 1, %s2
  %s5 = scalar_select 0, %s4, %s2
  %s7 = sshll.u32 1, 14
  %s8 = sxor.u32 4294967295, %s7
  %s11 = sshll.u32 3, 24
  %s12 = sxor.u32 4294967295, %s11
  %s13 = sand.u32 0, %s12
  %s15 = sor.u32 %s13, 0
  %18 = dma.general %s0, 256, %s1, [#allocation2], [#allocation3], [#allocation4], %s15, 0
  %s19 = smul.u32 2, 8
  %s20 = smul.u32 %s19, 1
  %s21 = sshll.u32 %s20, 4
  %22 = dma.done [#allocation2], %s21
  %23 = vsyncmov [#allocation2]
  %s24 = vpop.sfrf %23
  %p25 = scmp.eq.s32.totalorder %s24, 0
  %p26 = pneg %p25
  %28 = shalt.err (%p26)

</llo_original>
